<compile_context>
chip_gen: v6e
topology: v6e:2x2x1
jax: 0.10.0
libtpu: 0.0.40
codegen_flags: <defaults>
</compile_context>

<pallas_src>
import jax
import jax.numpy as jnp
from jax.experimental import pallas as pl
from jax.experimental.pallas import tpu as pltpu

_LANE = 128
_SUBLANE = 8


def _round_up(x, m):
    return ((x + m - 1) // m) * m


def _vmem_capacity_bytes():
    try:
        return int(pltpu.get_tpu_info().vmem_capacity_bytes)
    except Exception:
        return 64 << 20  # conservative fallback: v7x per-core VMEM


def _make_mlp_kernel(num_hidden, use_layer_norm, real_hidden_widths, eps=1e-5):
    """Kernel computing one batch tile of the full MLP forward.

    Ref order: x, [W, b, (gamma, beta)] * num_hidden, W_out, b_out, q_out.
    Hidden/output feature dims are 128-lane padded with zero parameters, so
    padded activation lanes are exactly zero throughout; x and W0's rows stay
    at the real state_dim.
    """
    params_per_layer = 4 if use_layer_norm else 2
    n_in = 1 + num_hidden * params_per_layer + 2
    inv_d = tuple(1.0 / float(w) for w in real_hidden_widths)

    def kernel(*refs):
        in_refs = refs[:n_in]
        q_ref = refs[n_in]

        h = in_refs[0][...]
        idx = 1
        for li in range(num_hidden):
            w = in_refs[idx][...]
            b = in_refs[idx + 1][...]
            idx += 2
            # cast activations to the weight dtype (bf16 on v6e/v7x MXU path),
            # accumulate in f32; bias add + LN + ReLU stay in f32.
            h = jnp.dot(h.astype(w.dtype), w, preferred_element_type=jnp.float32) + b
            if use_layer_norm:
                gamma = in_refs[idx][...]
                beta = in_refs[idx + 1][...]
                idx += 2
                # Padded lanes of h are exactly 0, so full-width sums equal
                # real-width sums; normalize by the real width (precomputed
                # 1/d, single-pass variance clamped at 0).
                mean = jnp.sum(h, axis=-1, keepdims=True) * inv_d[li]
                mean_sq = jnp.sum(h * h, axis=-1, keepdims=True) * inv_d[li]
                var = jnp.maximum(mean_sq - mean * mean, 0.0)
                h = (h - mean) * jax.lax.rsqrt(var + eps) * gamma + beta
            h = jnp.maximum(h, 0.0)  # ReLU

        w_out = in_refs[idx][...]
        b_out = in_refs[idx + 1][...]
        q = jnp.dot(h.astype(w_out.dtype), w_out, preferred_element_type=jnp.float32)
        q_ref[...] = (q + b_out).astype(q_ref.dtype)

    return kernel


class VanillaQValueMultiHeadNetworkPallas:
    def __init__(self, state_dim, action_dim, hidden_dims, use_layer_norm=False,
                 matmul_dtype=jnp.float32, max_tile_rows=2048, key=None):
        self._state_dim = int(state_dim)
        self._action_dim = int(action_dim)
        self._hidden_dims = [int(d) for d in hidden_dims]
        self._use_layer_norm = bool(use_layer_norm)
        self._matmul_dtype = jnp.dtype(matmul_dtype)
        self._max_tile_rows = int(max_tile_rows)

        if key is None:
            key = jax.random.PRNGKey(0)

        dims = [self._state_dim] + self._hidden_dims + [self._action_dim]
        pdims = [_round_up(d, _LANE) for d in dims]
        self._dims = dims
        self._pdims = pdims

        params = []       # logical (unpadded, f32) params, for the reference check
        flat_padded = []  # lane-padded params fed to the kernel
        n_hidden = len(self._hidden_dims)
        for i in range(len(dims) - 1):
            fan_in, fan_out = dims[i], dims[i + 1]
            # First layer: x arrives unpadded, so W0 keeps only state_dim rows.
            rows = fan_in if i == 0 else pdims[i]
            pout = pdims[i + 1]
            key, kw, kb = jax.random.split(key, 3)
            bound = 1.0 / float(fan_in) ** 0.5
            # Stored as (in, out): kernel computes x @ W  (== x @ W_pt.T + b).
            w = jax.random.uniform(kw, (fan_in, fan_out), jnp.float32, -bound, bound)
            b = jax.random.uniform(kb, (1, fan_out), jnp.float32, -bound, bound)
            layer = {"w": w, "b": b}

            w_pad = jnp.zeros((rows, pout), self._matmul_dtype)
            w_pad = w_pad.at[:fan_in, :fan_out].set(w.astype(self._matmul_dtype))
            b_pad = jnp.zeros((1, pout), jnp.float32).at[:, :fan_out].set(b)
            flat_padded += [w_pad, b_pad]

            if i < n_hidden and self._use_layer_norm:
                gamma = jnp.ones((1, fan_out), jnp.float32)
                beta = jnp.zeros((1, fan_out), jnp.float32)
                layer["gamma"], layer["beta"] = gamma, beta
                # zero-padded affine params keep padded lanes at exactly zero
                g_pad = jnp.zeros((1, pout), jnp.float32).at[:, :fan_out].set(gamma)
                t_pad = jnp.zeros((1, pout), jnp.float32).at[:, :fan_out].set(beta)
                flat_padded += [g_pad, t_pad]
            params.append(layer)

        self._params = params
        self._flat_padded = tuple(flat_padded)
        self._kernel = _make_mlp_kernel(
            n_hidden, self._use_layer_norm, tuple(self._hidden_dims)
        )
        self._fwd_cache = {}  # batch_size -> jitted forward fn

    @property
    def state_dim(self):
        return self._state_dim

    @property
    def action_dim(self):
        return self._action_dim

    # ---- tiling / VMEM policy -------------------------------------------------

    def _choose_tiling(self, batch):
        max_rows = max(_round_up(self._max_tile_rows, _SUBLANE), _SUBLANE)
        n_steps = pl.cdiv(batch, max_rows)
        # Keep >= 2 grid steps for large batches so both v7x TensorCores get
        # work under dimension_semantics=("parallel",); negligible cost on
        # single-TC chips (one extra ~0.35us grid step).
        if n_steps == 1 and batch >= 512:
            n_steps = 2
        tile_b = _round_up(pl.cdiv(batch, n_steps), _SUBLANE)
        b_pad = tile_b * n_steps
        return tile_b, b_pad, n_steps

    def _vmem_limit_bytes(self, tile_b, single_buffer_weights):
        weight_bufs = 1 if single_buffer_weights else 2
        param_bytes = weight_bufs * sum(
            int(p.size) * p.dtype.itemsize for p in self._flat_padded
        )
        in_tiles = 2 * tile_b * self._state_dim * 4        # double-buffered x (f32)
        out_tiles = 2 * tile_b * self._pdims[-1] * 4       # double-buffered q (f32)
        act_bytes = 3 * tile_b * max(self._pdims) * 4      # live f32 activations
        need = param_bytes + in_tiles + out_tiles + act_bytes + (4 << 20)  # Mosaic scratch
        cap = _vmem_capacity_bytes()
        return int(max(min(need, (cap * 3) // 4), 16 << 20))

    # ---- kernel call construction ----------------------------------------------

    def _build_forward_fn(self, batch, single_buffer_weights):
        tile_b, b_pad, n_steps = self._choose_tiling(batch)
        d_in = self._state_dim
        a_pad = self._pdims[-1]

        weight_kwargs = {}
        if single_buffer_weights:
            # Constant-index blocks never change across the grid: single buffer.
            weight_kwargs["pipeline_mode"] = pl.Buffered(buffer_count=1)

        # x: batch-tiled, feature axis unpadded (full last-dim block).
        in_specs = [pl.BlockSpec((tile_b, d_in), lambda b: (b, 0))]
        for p in self._flat_padded:
            in_specs.append(pl.BlockSpec(p.shape, lambda b: (0, 0), **weight_kwargs))

        call = pl.pallas_call(
            self._kernel,
            out_shape=jax.ShapeDtypeStruct((b_pad, a_pad), jnp.float32),
            grid=(n_steps,),
            in_specs=in_specs,
            out_specs=pl.BlockSpec((tile_b, a_pad), lambda b: (b, 0)),
            compiler_params=pltpu.CompilerParams(
                dimension_semantics=("parallel",),
                vmem_limit_bytes=self._vmem_limit_bytes(tile_b, single_buffer_weights),
            ),
        )

        action_dim = self._action_dim

        def fwd(x, *flat):
            x = x.astype(jnp.float32)
            if b_pad != batch:
                # pad only batch rows (cheap, no 128-lane feature inflation)
                x = jnp.pad(x, ((0, b_pad - batch), (0, 0)))
            q_pad = call(x, *flat)
            return q_pad[:batch, :action_dim]

        return jax.jit(fwd)

    # ---- public API -------------------------------------------------------------

    def forward(self, x):
        x = jnp.asarray(x, jnp.float32)
        batch = int(x.shape[0])
        fn = self._fwd_cache.get(batch)
        if fn is not None:
            return fn(x, *self._flat_padded)

        last_err = None
        # Prefer single-buffered resident weights; fall back to the default
        # double-buffering if this Pallas version rejects Buffered(1).
        for single_buffer_weights in (True, False):
            try:
                cand = self._build_forward_fn(batch, single_buffer_weights)
                out = cand(x, *self._flat_padded)
                jax.block_until_ready(out)
            except Exception as err:  # pragma: no cover - fallback path
                last_err = err
                continue
            self._fwd_cache[batch] = cand
            return out
        raise last_err

    def get_q_values(self, state_batch, action_batch):
        q_values = self.forward(state_batch)
        action_batch = jnp.asarray(action_batch, jnp.float32)
        if action_batch.ndim == 2:
            # (q * a).sum(-1) stays in the XLA wrapper: a (B, 1) kernel output
            # would force masked 1/128-lane stores for negligible saved work.
            return jnp.sum(q_values * action_batch, axis=-1)
        # 3-D action batch: torch.bmm(action, q.unsqueeze(-1)).squeeze(-1)
        return jnp.einsum("bka,ba->bk", action_batch, q_values)


def _reference(net, state_batch, action_batch):
    """Pure-JAX (f32) reference of the same math for a correctness check."""
    h = jnp.asarray(state_batch, jnp.float32)
    n_hidden = len(net._hidden_dims)
    for i, layer in enumerate(net._params):
        h = h @ layer["w"] + layer["b"]
        if i < n_hidden:
            if net._use_layer_norm:
                mean = jnp.mean(h, axis=-1, keepdims=True)
                var = jnp.mean((h - mean) ** 2, axis=-1, keepdims=True)
                h = (h - mean) / jnp.sqrt(var + 1e-5) * layer["gamma"] + layer["beta"]
            h = jnp.maximum(h, 0.0)
    q = h
    return q, jnp.sum(q * jnp.asarray(action_batch, jnp.float32), axis=-1)


if __name__ == "__main__":
    state_dim, action_dim = 16, 8
    hidden_dims = [32, 32]
    batch = 2

    root = jax.random.PRNGKey(0)
    k_state, k_act, k_params, k_state_big = jax.random.split(root, 4)
    state_batch = jax.random.normal(k_state, (batch, state_dim), jnp.float32)
    # one-hot action batch (2-D case of get_q_values)
    action_idx = jax.random.randint(k_act, (batch,), 0, action_dim)
    action_batch = jax.nn.one_hot(action_idx, action_dim, dtype=jnp.float32)

    configs = [
        # (use_layer_norm, matmul dtype, tolerance)
        (False, jnp.float32, 1e-4),
        (True, jnp.float32, 1e-4),
        (False, jnp.bfloat16, 5e-2),   # bf16 MXU path for v6e/v7x
        (True, jnp.bfloat16, 5e-2),
    ]
    for cfg_i, (use_ln, mm_dtype, tol) in enumerate(configs):
        net = VanillaQValueMultiHeadNetworkPallas(
            state_dim, action_dim, hidden_dims,
            use_layer_norm=use_ln, matmul_dtype=mm_dtype,
            key=jax.random.fold_in(k_params, cfg_i),
        )

        q_values = net.forward(state_batch)
        q_sa = net.get_q_values(state_batch, action_batch)
        jax.block_until_ready((q_values, q_sa))

        q_ref, q_sa_ref = _reference(net, state_batch, action_batch)
        assert q_values.shape == (batch, action_dim)
        assert q_sa.shape == (batch,)
        assert jnp.allclose(q_values, q_ref, atol=tol, rtol=tol), \
            f"q mismatch (ln={use_ln}, dtype={mm_dtype})"
        assert jnp.allclose(q_sa, q_sa_ref, atol=tol, rtol=tol), \
            f"q_sa mismatch (ln={use_ln}, dtype={mm_dtype})"

        # 3-D action-batch path (per-sample action sets): wrapper-side bmm
        k3 = jax.random.fold_in(k_act, cfg_i + 7)
        action3 = jax.random.normal(k3, (batch, 3, action_dim), jnp.float32)
        q3 = net.get_q_values(state_batch, action3)
        q3_ref = jnp.einsum("bka,ba->bk", action3, q_ref)
        assert q3.shape == (batch, 3)
        assert jnp.allclose(q3, q3_ref, atol=tol, rtol=tol), \
            f"bmm mismatch (ln={use_ln}, dtype={mm_dtype})"

    # Multi-step grid + batch-tail padding path: a small max_tile_rows forces
    # grid > 1 on a modest batch, exercising the tiled/parallel codegen.
    net_tiled = VanillaQValueMultiHeadNetworkPallas(
        state_dim, action_dim, hidden_dims, use_layer_norm=True,
        matmul_dtype=jnp.float32, max_tile_rows=64,
        key=jax.random.fold_in(k_params, 100),
    )
    big_batch = 200
    state_big = jax.random.normal(k_state_big, (big_batch, state_dim), jnp.float32)
    q_big = net_tiled.forward(state_big)
    jax.block_until_ready(q_big)
    q_big_ref, _ = _reference(net_tiled, state_big,
                              jnp.zeros((big_batch, action_dim), jnp.float32))
    assert q_big.shape == (big_batch, action_dim)
    assert jnp.allclose(q_big, q_big_ref, atol=1e-4, rtol=1e-4), "tiled-grid mismatch"

    print("KERNEL_OK")
</pallas_src>

<mosaic_0001>
module attributes {stable_mosaic.version = 11 : i64} {
  func.func @kernel(%arg0: i32, %arg1: memref<8x16xf32, #tpu.memory_space<vmem>>, %arg2: memref<16x128xf32, #tpu.memory_space<vmem>>, %arg3: memref<1x128xf32, #tpu.memory_space<vmem>>, %arg4: memref<128x128xf32, #tpu.memory_space<vmem>>, %arg5: memref<1x128xf32, #tpu.memory_space<vmem>>, %arg6: memref<128x128xf32, #tpu.memory_space<vmem>>, %arg7: memref<1x128xf32, #tpu.memory_space<vmem>>, %arg8: memref<8x128xf32, #tpu.memory_space<vmem>>) attributes {dimension_semantics = [#tpu.dimension_semantics<parallel>], iteration_bounds = array<i64: 1>, scalar_prefetch = 0 : i64, scratch_operands = 0 : i64, tpu.core_type = #tpu.core_type<tc>, window_params = [{transform_indices = @transform_0, window_bounds = array<i64: 8, 16>}, {pipeline_mode = #tpu.pipeline_mode<synchronous>, transform_indices = @transform_1, window_bounds = array<i64: 16, 128>}, {pipeline_mode = #tpu.pipeline_mode<synchronous>, transform_indices = @transform_2, window_bounds = array<i64: 1, 128>}, {pipeline_mode = #tpu.pipeline_mode<synchronous>, transform_indices = @transform_3, window_bounds = array<i64: 128, 128>}, {pipeline_mode = #tpu.pipeline_mode<synchronous>, transform_indices = @transform_4, window_bounds = array<i64: 1, 128>}, {pipeline_mode = #tpu.pipeline_mode<synchronous>, transform_indices = @transform_5, window_bounds = array<i64: 128, 128>}, {pipeline_mode = #tpu.pipeline_mode<synchronous>, transform_indices = @transform_6, window_bounds = array<i64: 1, 128>}, {transform_indices = @transform_7, window_bounds = array<i64: 8, 128>}]} {
    %c0 = arith.constant 0 : index
    %c0_0 = arith.constant 0 : index
    %0 = vector.load %arg1[%c0, %c0_0] : memref<8x16xf32, #tpu.memory_space<vmem>>, vector<8x16xf32>
    %c0_1 = arith.constant 0 : index
    %c0_2 = arith.constant 0 : index
    %1 = vector.load %arg2[%c0_1, %c0_2] : memref<16x128xf32, #tpu.memory_space<vmem>>, vector<16x128xf32>
    %c0_3 = arith.constant 0 : index
    %c0_4 = arith.constant 0 : index
    %2 = vector.load %arg3[%c0_3, %c0_4] : memref<1x128xf32, #tpu.memory_space<vmem>>, vector<1x128xf32>
    %cst = arith.constant dense<0.000000e+00> : vector<8x128xf32>
    %3 = tpu.matmul %0, %1, %cst {dimension_numbers = #tpu.dot_dimension_numbers<[1], [0], [0], [1], [0, 0, 1, 1], [], []>} : vector<8x16xf32>, vector<16x128xf32>, vector<8x128xf32> -> vector<8x128xf32>
    %4 = vector.broadcast %2 : vector<1x128xf32> to vector<8x128xf32>
    %5 = arith.addf %3, %4 : vector<8x128xf32>
    %cst_5 = arith.constant 0.000000e+00 : f32
    %6 = vector.broadcast %cst_5 : f32 to vector<8x128xf32>
    %7 = arith.maximumf %5, %6 : vector<8x128xf32>
    %c0_6 = arith.constant 0 : index
    %c0_7 = arith.constant 0 : index
    %8 = vector.load %arg4[%c0_6, %c0_7] : memref<128x128xf32, #tpu.memory_space<vmem>>, vector<128x128xf32>
    %c0_8 = arith.constant 0 : index
    %c0_9 = arith.constant 0 : index
    %9 = vector.load %arg5[%c0_8, %c0_9] : memref<1x128xf32, #tpu.memory_space<vmem>>, vector<1x128xf32>
    %cst_10 = arith.constant dense<0.000000e+00> : vector<8x128xf32>
    %10 = tpu.matmul %7, %8, %cst_10 {dimension_numbers = #tpu.dot_dimension_numbers<[1], [0], [0], [1], [0, 0, 1, 1], [], []>} : vector<8x128xf32>, vector<128x128xf32>, vector<8x128xf32> -> vector<8x128xf32>
    %11 = vector.broadcast %9 : vector<1x128xf32> to vector<8x128xf32>
    %12 = arith.addf %10, %11 : vector<8x128xf32>
    %cst_11 = arith.constant 0.000000e+00 : f32
    %13 = vector.broadcast %cst_11 : f32 to vector<8x128xf32>
    %14 = arith.maximumf %12, %13 : vector<8x128xf32>
    %c0_12 = arith.constant 0 : index
    %c0_13 = arith.constant 0 : index
    %15 = vector.load %arg6[%c0_12, %c0_13] : memref<128x128xf32, #tpu.memory_space<vmem>>, vector<128x128xf32>
    %c0_14 = arith.constant 0 : index
    %c0_15 = arith.constant 0 : index
    %16 = vector.load %arg7[%c0_14, %c0_15] : memref<1x128xf32, #tpu.memory_space<vmem>>, vector<1x128xf32>
    %cst_16 = arith.constant dense<0.000000e+00> : vector<8x128xf32>
    %17 = tpu.matmul %14, %15, %cst_16 {dimension_numbers = #tpu.dot_dimension_numbers<[1], [0], [0], [1], [0, 0, 1, 1], [], []>} : vector<8x128xf32>, vector<128x128xf32>, vector<8x128xf32> -> vector<8x128xf32>
    %18 = vector.broadcast %16 : vector<1x128xf32> to vector<8x128xf32>
    %19 = arith.addf %17, %18 : vector<8x128xf32>
    %c0_17 = arith.constant 0 : index
    %c0_18 = arith.constant 0 : index
    %20 = vector.load %arg8[%c0_17, %c0_18] : memref<8x128xf32, #tpu.memory_space<vmem>>, vector<8x128xf32>
    tpu.vector_store %arg8[%c0_17, %c0_18], %19 {strides = array<i32>} : memref<8x128xf32, #tpu.memory_space<vmem>>, vector<8x128xf32>,
    return
  }
  func.func @transform_0(%arg0: i32) -> (i32, i32) {
    %c0_i32 = arith.constant 0 : i32
    %c0_i32_0 = arith.constant 0 : i32
    return %arg0, %c0_i32 : i32, i32
  }
  func.func @transform_1(%arg0: i32) -> (i32, i32) {
    %c0_i32 = arith.constant 0 : i32
    %c0_i32_0 = arith.constant 0 : i32
    %c0_i32_1 = arith.constant 0 : i32
    return %c0_i32, %c0_i32_0 : i32, i32
  }
  func.func @transform_2(%arg0: i32) -> (i32, i32) {
    %c0_i32 = arith.constant 0 : i32
    %c0_i32_0 = arith.constant 0 : i32
    %c0_i32_1 = arith.constant 0 : i32
    return %c0_i32, %c0_i32_0 : i32, i32
  }
  func.func @transform_3(%arg0: i32) -> (i32, i32) {
    %c0_i32 = arith.constant 0 : i32
    %c0_i32_0 = arith.constant 0 : i32
    %c0_i32_1 = arith.constant 0 : i32
    return %c0_i32, %c0_i32_0 : i32, i32
  }
  func.func @transform_4(%arg0: i32) -> (i32, i32) {
    %c0_i32 = arith.constant 0 : i32
    %c0_i32_0 = arith.constant 0 : i32
    %c0_i32_1 = arith.constant 0 : i32
    return %c0_i32, %c0_i32_0 : i32, i32
  }
  func.func @transform_5(%arg0: i32) -> (i32, i32) {
    %c0_i32 = arith.constant 0 : i32
    %c0_i32_0 = arith.constant 0 : i32
    %c0_i32_1 = arith.constant 0 : i32
    return %c0_i32, %c0_i32_0 : i32, i32
  }
  func.func @transform_6(%arg0: i32) -> (i32, i32) {
    %c0_i32 = arith.constant 0 : i32
    %c0_i32_0 = arith.constant 0 : i32
    %c0_i32_1 = arith.constant 0 : i32
    return %c0_i32, %c0_i32_0 : i32, i32
  }
  func.func @transform_7(%arg0: i32) -> (i32, i32) {
    %c0_i32 = arith.constant 0 : i32
    %c0_i32_0 = arith.constant 0 : i32
    return %arg0, %c0_i32 : i32, i32
  }
}

module attributes {stable_mosaic.version = 11 : i64} {
  func.func @kernel(%arg0: i32, %arg1: memref<8x16xf32, #tpu.memory_space<vmem>>, %arg2: memref<16x128xf32, #tpu.memory_space<vmem>>, %arg3: memref<1x128xf32, #tpu.memory_space<vmem>>, %arg4: memref<128x128xf32, #tpu.memory_space<vmem>>, %arg5: memref<1x128xf32, #tpu.memory_space<vmem>>, %arg6: memref<128x128xf32, #tpu.memory_space<vmem>>, %arg7: memref<1x128xf32, #tpu.memory_space<vmem>>, %arg8: memref<8x128xf32, #tpu.memory_space<vmem>>) attributes {dimension_semantics = [#tpu.dimension_semantics<parallel>], iteration_bounds = array<i64: 1>, scalar_prefetch = 0 : i64, scratch_operands = 0 : i64, tpu.core_type = #tpu.core_type<tc>, window_params = [{transform_indices = @transform_0, window_bounds = array<i64: 8, 16>}, {pipeline_mode = #tpu.pipeline_mode<synchronous>, transform_indices = @transform_1, window_bounds = array<i64: 16, 128>}, {pipeline_mode = #tpu.pipeline_mode<synchronous>, transform_indices = @transform_2, window_bounds = array<i64: 1, 128>}, {pipeline_mode = #tpu.pipeline_mode<synchronous>, transform_indices = @transform_3, window_bounds = array<i64: 128, 128>}, {pipeline_mode = #tpu.pipeline_mode<synchronous>, transform_indices = @transform_4, window_bounds = array<i64: 1, 128>}, {pipeline_mode = #tpu.pipeline_mode<synchronous>, transform_indices = @transform_5, window_bounds = array<i64: 128, 128>}, {pipeline_mode = #tpu.pipeline_mode<synchronous>, transform_indices = @transform_6, window_bounds = array<i64: 1, 128>}, {transform_indices = @transform_7, window_bounds = array<i64: 8, 128>}]} {
    %c0 = arith.constant 0 : index
    %c0_0 = arith.constant 0 : index
    %0 = vector.load %arg1[%c0, %c0_0] : memref<8x16xf32, #tpu.memory_space<vmem>>, vector<8x16xf32>
    %c0_1 = arith.constant 0 : index
    %c0_2 = arith.constant 0 : index
    %1 = vector.load %arg2[%c0_1, %c0_2] : memref<16x128xf32, #tpu.memory_space<vmem>>, vector<16x128xf32>
    %c0_3 = arith.constant 0 : index
    %c0_4 = arith.constant 0 : index
    %2 = vector.load %arg3[%c0_3, %c0_4] : memref<1x128xf32, #tpu.memory_space<vmem>>, vector<1x128xf32>
    %cst = arith.constant dense<0.000000e+00> : vector<8x128xf32>
    %3 = tpu.matmul %0, %1, %cst {dimension_numbers = #tpu.dot_dimension_numbers<[1], [0], [0], [1], [0, 0, 1, 1], [], []>} : vector<8x16xf32>, vector<16x128xf32>, vector<8x128xf32> -> vector<8x128xf32>
    %4 = vector.broadcast %2 : vector<1x128xf32> to vector<8x128xf32>
    %5 = arith.addf %3, %4 : vector<8x128xf32>
    %cst_5 = arith.constant 0.000000e+00 : f32
    %6 = vector.broadcast %cst_5 : f32 to vector<8x128xf32>
    %7 = arith.maximumf %5, %6 : vector<8x128xf32>
    %c0_6 = arith.constant 0 : index
    %c0_7 = arith.constant 0 : index
    %8 = vector.load %arg4[%c0_6, %c0_7] : memref<128x128xf32, #tpu.memory_space<vmem>>, vector<128x128xf32>
    %c0_8 = arith.constant 0 : index
    %c0_9 = arith.constant 0 : index
    %9 = vector.load %arg5[%c0_8, %c0_9] : memref<1x128xf32, #tpu.memory_space<vmem>>, vector<1x128xf32>
    %cst_10 = arith.constant dense<0.000000e+00> : vector<8x128xf32>
    %10 = tpu.matmul %7, %8, %cst_10 {dimension_numbers = #tpu.dot_dimension_numbers<[1], [0], [0], [1], [0, 0, 1, 1], [], []>} : vector<8x128xf32>, vector<128x128xf32>, vector<8x128xf32> -> vector<8x128xf32>
    %11 = vector.broadcast %9 : vector<1x128xf32> to vector<8x128xf32>
    %12 = arith.addf %10, %11 : vector<8x128xf32>
    %cst_11 = arith.constant 0.000000e+00 : f32
    %13 = vector.broadcast %cst_11 : f32 to vector<8x128xf32>
    %14 = arith.maximumf %12, %13 : vector<8x128xf32>
    %c0_12 = arith.constant 0 : index
    %c0_13 = arith.constant 0 : index
    %15 = vector.load %arg6[%c0_12, %c0_13] : memref<128x128xf32, #tpu.memory_space<vmem>>, vector<128x128xf32>
    %c0_14 = arith.constant 0 : index
    %c0_15 = arith.constant 0 : index
    %16 = vector.load %arg7[%c0_14, %c0_15] : memref<1x128xf32, #tpu.memory_space<vmem>>, vector<1x128xf32>
    %cst_16 = arith.constant dense<0.000000e+00> : vector<8x128xf32>
    %17 = tpu.matmul %14, %15, %cst_16 {dimension_numbers = #tpu.dot_dimension_numbers<[1], [0], [0], [1], [0, 0, 1, 1], [], []>} : vector<8x128xf32>, vector<128x128xf32>, vector<8x128xf32> -> vector<8x128xf32>
    %18 = vector.broadcast %16 : vector<1x128xf32> to vector<8x128xf32>
    %19 = arith.addf %17, %18 : vector<8x128xf32>
    %c0_17 = arith.constant 0 : index
    %c0_18 = arith.constant 0 : index
    %20 = vector.load %arg8[%c0_17, %c0_18] : memref<8x128xf32, #tpu.memory_space<vmem>>, vector<8x128xf32>
    tpu.vector_store %arg8[%c0_17, %c0_18], %19 {strides = array<i32>} : memref<8x128xf32, #tpu.memory_space<vmem>>, vector<8x128xf32>,
    return
  }
  func.func @transform_0(%arg0: i32) -> (i32, i32) {
    %c0_i32 = arith.constant 0 : i32
    %c0_i32_0 = arith.constant 0 : i32
    return %arg0, %c0_i32 : i32, i32
  }
  func.func @transform_1(%arg0: i32) -> (i32, i32) {
    %c0_i32 = arith.constant 0 : i32
    %c0_i32_0 = arith.constant 0 : i32
    %c0_i32_1 = arith.constant 0 : i32
    return %c0_i32, %c0_i32_0 : i32, i32
  }
  func.func @transform_2(%arg0: i32) -> (i32, i32) {
    %c0_i32 = arith.constant 0 : i32
    %c0_i32_0 = arith.constant 0 : i32
    %c0_i32_1 = arith.constant 0 : i32
    return %c0_i32, %c0_i32_0 : i32, i32
  }
  func.func @transform_3(%arg0: i32) -> (i32, i32) {
    %c0_i32 = arith.constant 0 : i32
    %c0_i32_0 = arith.constant 0 : i32
    %c0_i32_1 = arith.constant 0 : i32
    return %c0_i32, %c0_i32_0 : i32, i32
  }
  func.func @transform_4(%arg0: i32) -> (i32, i32) {
    %c0_i32 = arith.constant 0 : i32
    %c0_i32_0 = arith.constant 0 : i32
    %c0_i32_1 = arith.constant 0 : i32
    return %c0_i32, %c0_i32_0 : i32, i32
  }
  func.func @transform_5(%arg0: i32) -> (i32, i32) {
    %c0_i32 = arith.constant 0 : i32
    %c0_i32_0 = arith.constant 0 : i32
    %c0_i32_1 = arith.constant 0 : i32
    return %c0_i32, %c0_i32_0 : i32, i32
  }
  func.func @transform_6(%arg0: i32) -> (i32, i32) {
    %c0_i32 = arith.constant 0 : i32
    %c0_i32_0 = arith.constant 0 : i32
    %c0_i32_1 = arith.constant 0 : i32
    return %c0_i32, %c0_i32_0 : i32, i32
  }
  func.func @transform_7(%arg0: i32) -> (i32, i32) {
    %c0_i32 = arith.constant 0 : i32
    %c0_i32_0 = arith.constant 0 : i32
    return %arg0, %c0_i32 : i32, i32
  }
}

</mosaic_0001>

<llo_original>
// kernel: fwd.1
$region0: #{fwd.1}
  #allocation0 [shape = 'u32[]', space=smem, size = 0x4, offset = 0x4, fixed_abs, tag = 'smem constant byte address 0x4 - core index']
  #allocation1 [shape = 'u32[144,128]{1,0:T(1,128)}', space=vmem, size = 0x12000, scoped, tag = 'internal scratch']
  %s0 = inlined_call_operand.vmem [shape: f32[8,16], index: 0, kind: input, shape index: {}]
  %s1 = inlined_call_operand.hbm [shape: f32[16,128], index: 1, kind: input, shape index: {}]
  %s2 = inlined_call_operand.vmem [shape: f32[1,128], index: 2, kind: input, shape index: {}]
  %s3 = inlined_call_operand.hbm [shape: f32[128,128], index: 3, kind: input, shape index: {}]
  %s4 = inlined_call_operand.vmem [shape: f32[1,128], index: 4, kind: input, shape index: {}]
  %s5 = inlined_call_operand.hbm [shape: f32[128,128], index: 5, kind: input, shape index: {}]
  %s6 = inlined_call_operand.vmem [shape: f32[1,128], index: 6, kind: input, shape index: {}]
  %s7 = inlined_call_operand.vmem [shape: f32[8,128], index: 7, kind: output, shape index: {}]
  %s8 = sld [smem:[#allocation0]]
  $region50: #{fwd.1} parent=0
    _
  %s10 = ssub.s32 1, %s8
  %s11 = scalar_select 0, %s10, %s8
  $region1: #{fwd.1} parent=0
    #allocation2 [shape = 'u8[8192]{0}', space=vmem, size = 0x2000, scoped, tag = 'input window, operand 1, single buffered']
    #allocation3 [shape = 's32[1]{0}', space=sflag, size = 0x4, scoped, tag = 'scoped memory for fwd.1']
    #allocation4 [shape = 'u8[65536]{0}', space=vmem, size = 0x10000, scoped, tag = 'input window, operand 3, single buffered']
    #allocation5 [shape = 's32[1]{0}', space=sflag, size = 0x4, scoped, tag = 'scoped memory for fwd.1']
    #allocation6 [shape = 'u8[65536]{0}', space=vmem, size = 0x10000, scoped, tag = 'input window, operand 5, single buffered']
    %12 = vsyncpa [#allocation3], 0
    %13 = vsyncpa [#allocation5], 0
    // Predicated region
    $region2: #{fwd.1} parent=1 // pred_check
      _
    $region3: #{fwd.1} parent=1 // pred_check_branch
      %15 = sbr.rel (0) target = $region5
    $region4: #{fwd.1} parent=1 // pred_region
      _
    $region5: #{fwd.1} parent=1 // pred_fallthru
      _
    // Predicated region
    $region6: #{fwd.1} parent=1 // pred_check
      _
    $region7: #{fwd.1} parent=1 // pred_check_branch
      %17 = sbr.rel (0) target = $region9
    $region8: #{fwd.1} parent=1 // pred_region
      %s19 = ssub.s32 256, 256
      %20 = vsyncadd [#allocation3], %s19
      %s21 = sshll.u32 [#allocation2], 4
      %s22 = int_to_ptr.vmem [resolvable:$true] %s21
      %27 = dma.hbm_to_vmem [thread:$0]  %s1, 256, %s22, [#allocation3], 128, 128, 8
    $region9: #{fwd.1} parent=1 // pred_fallthru
      _
    // Predicated region
    $region10: #{fwd.1} parent=1 // pred_check
      _
    $region11: #{fwd.1} parent=1 // pred_check_branch
      %29 = sbr.rel (0) target = $region13
    $region12: #{fwd.1} parent=1 // pred_region
      _
    $region13: #{fwd.1} parent=1 // pred_fallthru
      _
    // Predicated region
    $region14: #{fwd.1} parent=1 // pred_check
      _
    $region15: #{fwd.1} parent=1 // pred_check_branch
      %31 = sbr.rel (0) target = $region17
    $region16: #{fwd.1} parent=1 // pred_region
      %s33 = ssub.s32 2048, 2048
      %34 = vsyncadd [#allocation5], %s33
      %s35 = sshll.u32 [#allocation4], 4
      %s36 = int_to_ptr.vmem [resolvable:$true] %s35
      %41 = dma.hbm_to_vmem [thread:$0]  %s3, 2048, %s36, [#allocation5], 128, 128, 8
    $region17: #{fwd.1} parent=1 // pred_fallthru
      _
    // Predicated region
    $region18: #{fwd.1} parent=1 // pred_check
      _
    $region19: #{fwd.1} parent=1 // pred_check_branch
      %43 = sbr.rel (0) target = $region21
    $region20: #{fwd.1} parent=1 // pred_region
      _
    $region21: #{fwd.1} parent=1 // pred_fallthru
      _
    // Predicated region
    $region22: #{fwd.1} parent=1 // pred_check
      _
    $region23: #{fwd.1} parent=1 // pred_check_branch
      %45 = sbr.rel (0) target = $region25
    $region24: #{fwd.1} parent=1 // pred_region
      %s47 = ssub.s32 2048, 2048
      %48 = vsyncadd [#allocation5], %s47
      %s49 = sshll.u32 [#allocation6], 4
      %s50 = int_to_ptr.vmem [resolvable:$true] %s49
      %55 = dma.hbm_to_vmem [thread:$0]  %s5, 2048, %s50, [#allocation5], 128, 128, 8
    $region25: #{fwd.1} parent=1 // pred_fallthru
      _
    // Predicated region
    $region26: #{fwd.1} parent=1 // pred_check
      _
    $region27: #{fwd.1} parent=1 // pred_check_branch
      %57 = sbr.rel (0) target = $region29
    $region28: #{fwd.1} parent=1 // pred_region
      _
    $region29: #{fwd.1} parent=1 // pred_fallthru
      _
    // Predicated region
    $region30: #{fwd.1} parent=1 // pred_check
      _
    $region31: #{fwd.1} parent=1 // pred_check_branch
      %59 = sbr.rel (0) target = $region33
    $region32: #{fwd.1} parent=1 // pred_region
      %60 = dma.done [#allocation3], 256
    $region33: #{fwd.1} parent=1 // pred_fallthru
      _
    // Predicated region
    $region34: #{fwd.1} parent=1 // pred_check
      _
    $region35: #{fwd.1} parent=1 // pred_check_branch
      %62 = sbr.rel (0) target = $region37
    $region36: #{fwd.1} parent=1 // pred_region
      %63 = dma.done [#allocation5], 2048
    $region37: #{fwd.1} parent=1 // pred_fallthru
      _
    // Predicated region
    $region38: #{fwd.1} parent=1 // pred_check
      _
    $region39: #{fwd.1} parent=1 // pred_check_branch
      %65 = sbr.rel (0) target = $region41
    $region40: #{fwd.1} parent=1 // pred_region
      %66 = dma.done [#allocation5], 2048
    $region41: #{fwd.1} parent=1 // pred_fallthru
      _
    %v67 = vld [vmem:[%s0] sm:$0xff]
    %v68 = vld [vmem:[#allocation2] sm:$0xff]
    %v69 = vld [vmem:[#allocation2 + $0x8] sm:$0xff]
    %v70 = vld [vmem:[%s2] sm:$0x1]
    %v72 = vlaneseq
    %v73 = vshrl.u32 %v72, 7
    %v74 = vsub.s32 0, %v73
    %v75 = vrot.slane %v70, %v74
    %vm77 = vcmask 130048
    %v79 = vsel %vm77, %v67, 0
    %81 = vmatprep.subr.mxu0 0.0
    %82 = vmatpush1.msra.mxu0 0.0
    %83 = vmatprep.subr.mxu0 0.0
    %84 = vmatpush1.msra.mxu0 0.0
    %85 = vmatprep.subr.mxu0 0.0
    %86 = vmatpush1.msra.mxu0 0.0
    %87 = vmatprep.subr.mxu0 0.0
    %88 = vmatpush1.msra.mxu0 0.0
    %89 = vmatprep.subr.mxu0 0.0
    %90 = vmatpush1.msra.mxu0 0.0
    %91 = vmatprep.subr.mxu0 0.0
    %92 = vmatpush1.msra.mxu0 0.0
    %93 = vmatprep.subr.mxu0 0.0
    %94 = vmatpush1.msra.mxu0 0.0
    %95 = vmatprep.subr.mxu0 0.0
    %96 = vmatpush1.msra.mxu0 0.0
    %97 = vmatprep.subr.mxu0 0.0
    %98 = vmatpush1.msra.mxu0 0.0
    %99 = vmatprep.subr.mxu0 0.0
    %100 = vmatpush1.msra.mxu0 0.0
    %101 = vmatprep.subr.mxu0 0.0
    %102 = vmatpush1.msra.mxu0 0.0
    %103 = vmatprep.subr.mxu0 0.0
    %104 = vmatpush1.msra.mxu0 0.0
    %105 = vmatprep.subr.mxu0 0.0
    %106 = vmatpush1.msra.mxu0 0.0
    %107 = vmatprep.subr.mxu0 0.0
    %108 = vmatpush1.msra.mxu0 0.0
    %109 = vmatprep.subr.mxu0 0.0
    %110 = vmatpush1.msra.mxu0 %v69
    %111 = vmatprep.subr.mxu0 0.0
    %112 = vmatpush1.msra.mxu0 %v68
    %113 = vmatprep.subr.mxu0 0.0
    %114 = vmatpush2.msra.mxu0 0.0
    %115 = vmatprep.subr.mxu0 0.0
    %116 = vmatpush2.msra.mxu0 0.0
    %117 = vmatprep.subr.mxu0 0.0
    %118 = vmatpush2.msra.mxu0 0.0
    %119 = vmatprep.subr.mxu0 0.0
    %120 = vmatpush2.msra.mxu0 0.0
    %121 = vmatprep.subr.mxu0 0.0
    %122 = vmatpush2.msra.mxu0 0.0
    %123 = vmatprep.subr.mxu0 0.0
    %124 = vmatpush2.msra.mxu0 0.0
    %125 = vmatprep.subr.mxu0 0.0
    %126 = vmatpush2.msra.mxu0 0.0
    %127 = vmatprep.subr.mxu0 0.0
    %128 = vmatpush2.msra.mxu0 0.0
    %129 = vmatprep.subr.mxu0 0.0
    %130 = vmatpush2.msra.mxu0 0.0
    %131 = vmatprep.subr.mxu0 0.0
    %132 = vmatpush2.msra.mxu0 0.0
    %133 = vmatprep.subr.mxu0 0.0
    %134 = vmatpush2.msra.mxu0 0.0
    %135 = vmatprep.subr.mxu0 0.0
    %136 = vmatpush2.msra.mxu0 0.0
    %137 = vmatprep.subr.mxu0 0.0
    %138 = vmatpush2.msra.mxu0 0.0
    %139 = vmatprep.subr.mxu0 0.0
    %140 = vmatpush2.msra.mxu0 0.0
    %141 = vmatprep.subr.mxu0 0.0
    %142 = vmatpush2.msra.mxu0 0.0
    %143 = vmatprep.subr.mxu0 0.0
    %144 = vmatpush2.msra.mxu0 0.0
    %145 = vmatprep.mubr.f32.mxu0 0.0
    %146 = vmatmul.mubr.f32.gmra.mxu0 %v79
    %v147 = vpop.f32.mrf.mxu0
    %v148 = vadd.f32 %v75, %v147
    %v149 = vpop.f32.mrf.mxu0
    %150 = vdwg.mxu0
    %v151 = vmax.f32 %v148, 0.0
    %v152 = vld [vmem:[#allocation4] sm:$0xff]
    %v153 = vld [vmem:[#allocation4 + $0x8] sm:$0xff]
    %v154 = vld [vmem:[#allocation4 + $0x10] sm:$0xff]
    %v155 = vld [vmem:[#allocation4 + $0x18] sm:$0xff]
    %v156 = vld [vmem:[#allocation4 + $0x20] sm:$0xff]
    %v157 = vld [vmem:[#allocation4 + $0x28] sm:$0xff]
    %v158 = vld [vmem:[#allocation4 + $0x30] sm:$0xff]
    %v159 = vld [vmem:[#allocation4 + $0x38] sm:$0xff]
    %v160 = vld [vmem:[#allocation4 + $0x40] sm:$0xff]
    %v161 = vld [vmem:[#allocation4 + $0x48] sm:$0xff]
    %v162 = vld [vmem:[#allocation4 + $0x50] sm:$0xff]
    %v163 = vld [vmem:[#allocation4 + $0x58] sm:$0xff]
    %v164 = vld [vmem:[#allocation4 + $0x60] sm:$0xff]
    %v165 = vld [vmem:[#allocation4 + $0x68] sm:$0xff]
    %v166 = vld [vmem:[#allocation4 + $0x70] sm:$0xff]
    %v167 = vld [vmem:[#allocation4 + $0x78] sm:$0xff]
    %v168 = vld [vmem:[%s4] sm:$0x1]
    %v170 = vlaneseq
    %v171 = vshrl.u32 %v170, 7
    %v172 = vsub.s32 0, %v171
    %v173 = vrot.slane %v168, %v172
    %175 = vmatprep.subr.mxu0 0.0
    %176 = vmatpush1.msra.mxu0 %v167
    %177 = vmatprep.subr.mxu0 0.0
    %178 = vmatpush1.msra.mxu0 %v166
    %179 = vmatprep.subr.mxu0 0.0
    %180 = vmatpush1.msra.mxu0 %v165
    %181 = vmatprep.subr.mxu0 0.0
    %182 = vmatpush1.msra.mxu0 %v164
    %183 = vmatprep.subr.mxu0 0.0
    %184 = vmatpush1.msra.mxu0 %v163
    %185 = vmatprep.subr.mxu0 0.0
    %186 = vmatpush1.msra.mxu0 %v162
    %187 = vmatprep.subr.mxu0 0.0
    %188 = vmatpush1.msra.mxu0 %v161
    %189 = vmatprep.subr.mxu0 0.0
    %190 = vmatpush1.msra.mxu0 %v160
    %191 = vmatprep.subr.mxu0 0.0
    %192 = vmatpush1.msra.mxu0 %v159
    %193 = vmatprep.subr.mxu0 0.0
    %194 = vmatpush1.msra.mxu0 %v158
    %195 = vmatprep.subr.mxu0 0.0
    %196 = vmatpush1.msra.mxu0 %v157
    %197 = vmatprep.subr.mxu0 0.0
    %198 = vmatpush1.msra.mxu0 %v156
    %199 = vmatprep.subr.mxu0 0.0
    %200 = vmatpush1.msra.mxu0 %v155
    %201 = vmatprep.subr.mxu0 0.0
    %202 = vmatpush1.msra.mxu0 %v154
    %203 = vmatprep.subr.mxu0 0.0
    %204 = vmatpush1.msra.mxu0 %v153
    %205 = vmatprep.subr.mxu0 0.0
    %206 = vmatpush1.msra.mxu0 %v152
    %207 = vmatprep.subr.mxu0 0.0
    %208 = vmatpush2.msra.mxu0 0.0
    %209 = vmatprep.subr.mxu0 0.0
    %210 = vmatpush2.msra.mxu0 0.0
    %211 = vmatprep.subr.mxu0 0.0
    %212 = vmatpush2.msra.mxu0 0.0
    %213 = vmatprep.subr.mxu0 0.0
    %214 = vmatpush2.msra.mxu0 0.0
    %215 = vmatprep.subr.mxu0 0.0
    %216 = vmatpush2.msra.mxu0 0.0
    %217 = vmatprep.subr.mxu0 0.0
    %218 = vmatpush2.msra.mxu0 0.0
    %219 = vmatprep.subr.mxu0 0.0
    %220 = vmatpush2.msra.mxu0 0.0
    %221 = vmatprep.subr.mxu0 0.0
    %222 = vmatpush2.msra.mxu0 0.0
    %223 = vmatprep.subr.mxu0 0.0
    %224 = vmatpush2.msra.mxu0 0.0
    %225 = vmatprep.subr.mxu0 0.0
    %226 = vmatpush2.msra.mxu0 0.0
    %227 = vmatprep.subr.mxu0 0.0
    %228 = vmatpush2.msra.mxu0 0.0
    %229 = vmatprep.subr.mxu0 0.0
    %230 = vmatpush2.msra.mxu0 0.0
    %231 = vmatprep.subr.mxu0 0.0
    %232 = vmatpush2.msra.mxu0 0.0
    %233 = vmatprep.subr.mxu0 0.0
    %234 = vmatpush2.msra.mxu0 0.0
    %235 = vmatprep.subr.mxu0 0.0
    %236 = vmatpush2.msra.mxu0 0.0
    %237 = vmatprep.subr.mxu0 0.0
    %238 = vmatpush2.msra.mxu0 0.0
    %239 = vmatprep.mubr.f32.mxu0 0.0
    %240 = vmatmul.mubr.f32.gmra.mxu0 %v151
    %v241 = vpop.f32.mrf.mxu0
    %v242 = vadd.f32 %v173, %v241
    %v243 = vpop.f32.mrf.mxu0
    %244 = vdwg.mxu0
    %v245 = vmax.f32 %v242, 0.0
    %v246 = vld [vmem:[#allocation6] sm:$0xff]
    %v247 = vld [vmem:[#allocation6 + $0x8] sm:$0xff]
    %v248 = vld [vmem:[#allocation6 + $0x10] sm:$0xff]
    %v249 = vld [vmem:[#allocation6 + $0x18] sm:$0xff]
    %v250 = vld [vmem:[#allocation6 + $0x20] sm:$0xff]
    %v251 = vld [vmem:[#allocation6 + $0x28] sm:$0xff]
    %v252 = vld [vmem:[#allocation6 + $0x30] sm:$0xff]
    %v253 = vld [vmem:[#allocation6 + $0x38] sm:$0xff]
    %v254 = vld [vmem:[#allocation6 + $0x40] sm:$0xff]
    %v255 = vld [vmem:[#allocation6 + $0x48] sm:$0xff]
    %v256 = vld [vmem:[#allocation6 + $0x50] sm:$0xff]
    %v257 = vld [vmem:[#allocation6 + $0x58] sm:$0xff]
    %v258 = vld [vmem:[#allocation6 + $0x60] sm:$0xff]
    %v259 = vld [vmem:[#allocation6 + $0x68] sm:$0xff]
    %v260 = vld [vmem:[#allocation6 + $0x70] sm:$0xff]
    %v261 = vld [vmem:[#allocation6 + $0x78] sm:$0xff]
    %v262 = vld [vmem:[%s6] sm:$0x1]
    %v264 = vlaneseq
    %v265 = vshrl.u32 %v264, 7
    %v266 = vsub.s32 0, %v265
    %v267 = vrot.slane %v262, %v266
    %269 = vmatprep.subr.mxu0 0.0
    %270 = vmatpush1.msra.mxu0 %v261
    %271 = vmatprep.subr.mxu0 0.0
    %272 = vmatpush1.msra.mxu0 %v260
    %273 = vmatprep.subr.mxu0 0.0
    %274 = vmatpush1.msra.mxu0 %v259
    %275 = vmatprep.subr.mxu0 0.0
    %276 = vmatpush1.msra.mxu0 %v258
    %277 = vmatprep.subr.mxu0 0.0
    %278 = vmatpush1.msra.mxu0 %v257
    %279 = vmatprep.subr.mxu0 0.0
    %280 = vmatpush1.msra.mxu0 %v256
    %281 = vmatprep.subr.mxu0 0.0
    %282 = vmatpush1.msra.mxu0 %v255
    %283 = vmatprep.subr.mxu0 0.0
    %284 = vmatpush1.msra.mxu0 %v254
    %285 = vmatprep.subr.mxu0 0.0
    %286 = vmatpush1.msra.mxu0 %v253
    %287 = vmatprep.subr.mxu0 0.0
    %288 = vmatpush1.msra.mxu0 %v252
    %289 = vmatprep.subr.mxu0 0.0
    %290 = vmatpush1.msra.mxu0 %v251
    %291 = vmatprep.subr.mxu0 0.0
    %292 = vmatpush1.msra.mxu0 %v250
    %293 = vmatprep.subr.mxu0 0.0
    %294 = vmatpush1.msra.mxu0 %v249
    %295 = vmatprep.subr.mxu0 0.0
    %296 = vmatpush1.msra.mxu0 %v248
    %297 = vmatprep.subr.mxu0 0.0
    %298 = vmatpush1.msra.mxu0 %v247
    %299 = vmatprep.subr.mxu0 0.0
    %300 = vmatpush1.msra.mxu0 %v246
    %301 = vmatprep.subr.mxu0 0.0
    %302 = vmatpush2.msra.mxu0 0.0
    %303 = vmatprep.subr.mxu0 0.0
    %304 = vmatpush2.msra.mxu0 0.0
    %305 = vmatprep.subr.mxu0 0.0
    %306 = vmatpush2.msra.mxu0 0.0
    %307 = vmatprep.subr.mxu0 0.0
    %308 = vmatpush2.msra.mxu0 0.0
    %309 = vmatprep.subr.mxu0 0.0
    %310 = vmatpush2.msra.mxu0 0.0
    %311 = vmatprep.subr.mxu0 0.0
    %312 = vmatpush2.msra.mxu0 0.0
    %313 = vmatprep.subr.mxu0 0.0
    %314 = vmatpush2.msra.mxu0 0.0
    %315 = vmatprep.subr.mxu0 0.0
    %316 = vmatpush2.msra.mxu0 0.0
    %317 = vmatprep.subr.mxu0 0.0
    %318 = vmatpush2.msra.mxu0 0.0
    %319 = vmatprep.subr.mxu0 0.0
    %320 = vmatpush2.msra.mxu0 0.0
    %321 = vmatprep.subr.mxu0 0.0
    %322 = vmatpush2.msra.mxu0 0.0
    %323 = vmatprep.subr.mxu0 0.0
    %324 = vmatpush2.msra.mxu0 0.0
    %325 = vmatprep.subr.mxu0 0.0
    %326 = vmatpush2.msra.mxu0 0.0
    %327 = vmatprep.subr.mxu0 0.0
    %328 = vmatpush2.msra.mxu0 0.0
    %329 = vmatprep.subr.mxu0 0.0
    %330 = vmatpush2.msra.mxu0 0.0
    %331 = vmatprep.subr.mxu0 0.0
    %332 = vmatpush2.msra.mxu0 0.0
    %333 = vmatprep.mubr.f32.mxu0 0.0
    %334 = vmatmul.mubr.f32.gmra.mxu0 %v245
    %v335 = vpop.f32.mrf.mxu0
    %v336 = vadd.f32 %v267, %v335
    %v337 = vpop.f32.mrf.mxu0
    %338 = vdwg.mxu0
    %339 = vst [vmem:[%s7] sm:$0xff] %v336
    // Predicated region
    $region42: #{fwd.1} parent=1 // pred_check
      _
    $region43: #{fwd.1} parent=1 // pred_check_branch
      %341 = sbr.rel (0) target = $region45
    $region44: #{fwd.1} parent=1 // pred_region
      _
    $region45: #{fwd.1} parent=1 // pred_fallthru
      _
    // Predicated region
    $region46: #{fwd.1} parent=1 // pred_check
      _
    $region47: #{fwd.1} parent=1 // pred_check_branch
      %343 = sbr.rel (0) target = $region49
    $region48: #{fwd.1} parent=1 // pred_region
      _
    $region49: #{fwd.1} parent=1 // pred_fallthru
      _
    %344 = vsyncpa [#allocation3], 1
    %345 = vsyncpa [#allocation5], 1

// kernel: fwd.1
$region0: #{fwd.1}
  #allocation0 [shape = 'u32[]', space=smem, size = 0x4, offset = 0x4, fixed_abs, tag = 'smem constant byte address 0x4 - core index']
  #allocation1 [shape = 'u32[144,128]{1,0:T(1,128)}', space=vmem, size = 0x12000, scoped, tag = 'internal scratch']
  %s0 = inlined_call_operand.vmem [shape: f32[8,16], index: 0, kind: input, shape index: {}]
  %s1 = inlined_call_operand.hbm [shape: f32[16,128], index: 1, kind: input, shape index: {}]
  %s2 = inlined_call_operand.vmem [shape: f32[1,128], index: 2, kind: input, shape index: {}]
  %s3 = inlined_call_operand.hbm [shape: f32[128,128], index: 3, kind: input, shape index: {}]
  %s4 = inlined_call_operand.vmem [shape: f32[1,128], index: 4, kind: input, shape index: {}]
  %s5 = inlined_call_operand.hbm [shape: f32[128,128], index: 5, kind: input, shape index: {}]
  %s6 = inlined_call_operand.vmem [shape: f32[1,128], index: 6, kind: input, shape index: {}]
  %s7 = inlined_call_operand.vmem [shape: f32[8,128], index: 7, kind: output, shape index: {}]
  %s8 = sld [smem:[#allocation0]]
  $region50: #{fwd.1} parent=0
    _
  %s10 = ssub.s32 1, %s8
  %s11 = scalar_select 0, %s10, %s8
  $region1: #{fwd.1} parent=0
    #allocation2 [shape = 'u8[8192]{0}', space=vmem, size = 0x2000, scoped, tag = 'input window, operand 1, single buffered']
    #allocation3 [shape = 's32[1]{0}', space=sflag, size = 0x4, scoped, tag = 'scoped memory for fwd.1']
    #allocation4 [shape = 'u8[65536]{0}', space=vmem, size = 0x10000, scoped, tag = 'input window, operand 3, single buffered']
    #allocation5 [shape = 's32[1]{0}', space=sflag, size = 0x4, scoped, tag = 'scoped memory for fwd.1']
    #allocation6 [shape = 'u8[65536]{0}', space=vmem, size = 0x10000, scoped, tag = 'input window, operand 5, single buffered']
    %12 = vsyncpa [#allocation3], 0
    %13 = vsyncpa [#allocation5], 0
    // Predicated region
    $region2: #{fwd.1} parent=1 // pred_check
      _
    $region3: #{fwd.1} parent=1 // pred_check_branch
      %15 = sbr.rel (0) target = $region5
    $region4: #{fwd.1} parent=1 // pred_region
      _
    $region5: #{fwd.1} parent=1 // pred_fallthru
      _
    // Predicated region
    $region6: #{fwd.1} parent=1 // pred_check
      _
    $region7: #{fwd.1} parent=1 // pred_check_branch
      %17 = sbr.rel (0) target = $region9
    $region8: #{fwd.1} parent=1 // pred_region
      %s19 = ssub.s32 256, 256
      %20 = vsyncadd [#allocation3], %s19
      %s21 = sshll.u32 [#allocation2], 4
      %s22 = int_to_ptr.vmem [resolvable:$true] %s21
      %27 = dma.hbm_to_vmem [thread:$0]  %s1, 256, %s22, [#allocation3], 128, 128, 8
    $region9: #{fwd.1} parent=1 // pred_fallthru
      _
    // Predicated region
    $region10: #{fwd.1} parent=1 // pred_check
      _
    $region11: #{fwd.1} parent=1 // pred_check_branch
      %29 = sbr.rel (0) target = $region13
    $region12: #{fwd.1} parent=1 // pred_region
      _
    $region13: #{fwd.1} parent=1 // pred_fallthru
      _
    // Predicated region
    $region14: #{fwd.1} parent=1 // pred_check
      _
    $region15: #{fwd.1} parent=1 // pred_check_branch
      %31 = sbr.rel (0) target = $region17
    $region16: #{fwd.1} parent=1 // pred_region
      %s33 = ssub.s32 2048, 2048
      %34 = vsyncadd [#allocation5], %s33
      %s35 = sshll.u32 [#allocation4], 4
      %s36 = int_to_ptr.vmem [resolvable:$true] %s35
      %41 = dma.hbm_to_vmem [thread:$0]  %s3, 2048, %s36, [#allocation5], 128, 128, 8
    $region17: #{fwd.1} parent=1 // pred_fallthru
      _
    // Predicated region
    $region18: #{fwd.1} parent=1 // pred_check
      _
    $region19: #{fwd.1} parent=1 // pred_check_branch
      %43 = sbr.rel (0) target = $region21
    $region20: #{fwd.1} parent=1 // pred_region
      _
    $region21: #{fwd.1} parent=1 // pred_fallthru
      _
    // Predicated region
    $region22: #{fwd.1} parent=1 // pred_check
      _
    $region23: #{fwd.1} parent=1 // pred_check_branch
      %45 = sbr.rel (0) target = $region25
    $region24: #{fwd.1} parent=1 // pred_region
      %s47 = ssub.s32 2048, 2048
      %48 = vsyncadd [#allocation5], %s47
      %s49 = sshll.u32 [#allocation6], 4
      %s50 = int_to_ptr.vmem [resolvable:$true] %s49
      %55 = dma.hbm_to_vmem [thread:$0]  %s5, 2048, %s50, [#allocation5], 128, 128, 8
    $region25: #{fwd.1} parent=1 // pred_fallthru
      _
    // Predicated region
    $region26: #{fwd.1} parent=1 // pred_check
      _
    $region27: #{fwd.1} parent=1 // pred_check_branch
      %57 = sbr.rel (0) target = $region29
    $region28: #{fwd.1} parent=1 // pred_region
      _
    $region29: #{fwd.1} parent=1 // pred_fallthru
      _
    // Predicated region
    $region30: #{fwd.1} parent=1 // pred_check
      _
    $region31: #{fwd.1} parent=1 // pred_check_branch
      %59 = sbr.rel (0) target = $region33
    $region32: #{fwd.1} parent=1 // pred_region
      %60 = dma.done [#allocation3], 256
    $region33: #{fwd.1} parent=1 // pred_fallthru
      _
    // Predicated region
    $region34: #{fwd.1} parent=1 // pred_check
      _
    $region35: #{fwd.1} parent=1 // pred_check_branch
      %62 = sbr.rel (0) target = $region37
    $region36: #{fwd.1} parent=1 // pred_region
      %63 = dma.done [#allocation5], 2048
    $region37: #{fwd.1} parent=1 // pred_fallthru
      _
    // Predicated region
    $region38: #{fwd.1} parent=1 // pred_check
      _
    $region39: #{fwd.1} parent=1 // pred_check_branch
      %65 = sbr.rel (0) target = $region41
    $region40: #{fwd.1} parent=1 // pred_region
      %66 = dma.done [#allocation5], 2048
    $region41: #{fwd.1} parent=1 // pred_fallthru
      _
    %v67 = vld [vmem:[%s0] sm:$0xff]
    %v68 = vld [vmem:[#allocation2] sm:$0xff]
    %v69 = vld [vmem:[#allocation2 + $0x8] sm:$0xff]
    %v70 = vld [vmem:[%s2] sm:$0x1]
    %v72 = vlaneseq
    %v73 = vshrl.u32 %v72, 7
    %v74 = vsub.s32 0, %v73
    %v75 = vrot.slane %v70, %v74
    %vm77 = vcmask 130048
    %v79 = vsel %vm77, %v67, 0
    %81 = vmatprep.subr.mxu0 0.0
    %82 = vmatpush1.msra.mxu0 0.0
    %83 = vmatprep.subr.mxu0 0.0
    %84 = vmatpush1.msra.mxu0 0.0
    %85 = vmatprep.subr.mxu0 0.0
    %86 = vmatpush1.msra.mxu0 0.0
    %87 = vmatprep.subr.mxu0 0.0
    %88 = vmatpush1.msra.mxu0 0.0
    %89 = vmatprep.subr.mxu0 0.0
    %90 = vmatpush1.msra.mxu0 0.0
    %91 = vmatprep.subr.mxu0 0.0
    %92 = vmatpush1.msra.mxu0 0.0
    %93 = vmatprep.subr.mxu0 0.0
    %94 = vmatpush1.msra.mxu0 0.0
    %95 = vmatprep.subr.mxu0 0.0
    %96 = vmatpush1.msra.mxu0 0.0
    %97 = vmatprep.subr.mxu0 0.0
    %98 = vmatpush1.msra.mxu0 0.0
    %99 = vmatprep.subr.mxu0 0.0
    %100 = vmatpush1.msra.mxu0 0.0
    %101 = vmatprep.subr.mxu0 0.0
    %102 = vmatpush1.msra.mxu0 0.0
    %103 = vmatprep.subr.mxu0 0.0
    %104 = vmatpush1.msra.mxu0 0.0
    %105 = vmatprep.subr.mxu0 0.0
    %106 = vmatpush1.msra.mxu0 0.0
    %107 = vmatprep.subr.mxu0 0.0
    %108 = vmatpush1.msra.mxu0 0.0
    %109 = vmatprep.subr.mxu0 0.0
    %110 = vmatpush1.msra.mxu0 %v69
    %111 = vmatprep.subr.mxu0 0.0
    %112 = vmatpush1.msra.mxu0 %v68
    %113 = vmatprep.subr.mxu0 0.0
    %114 = vmatpush2.msra.mxu0 0.0
    %115 = vmatprep.subr.mxu0 0.0
    %116 = vmatpush2.msra.mxu0 0.0
    %117 = vmatprep.subr.mxu0 0.0
    %118 = vmatpush2.msra.mxu0 0.0
    %119 = vmatprep.subr.mxu0 0.0
    %120 = vmatpush2.msra.mxu0 0.0
    %121 = vmatprep.subr.mxu0 0.0
    %122 = vmatpush2.msra.mxu0 0.0
    %123 = vmatprep.subr.mxu0 0.0
    %124 = vmatpush2.msra.mxu0 0.0
    %125 = vmatprep.subr.mxu0 0.0
    %126 = vmatpush2.msra.mxu0 0.0
    %127 = vmatprep.subr.mxu0 0.0
    %128 = vmatpush2.msra.mxu0 0.0
    %129 = vmatprep.subr.mxu0 0.0
    %130 = vmatpush2.msra.mxu0 0.0
    %131 = vmatprep.subr.mxu0 0.0
    %132 = vmatpush2.msra.mxu0 0.0
    %133 = vmatprep.subr.mxu0 0.0
    %134 = vmatpush2.msra.mxu0 0.0
    %135 = vmatprep.subr.mxu0 0.0
    %136 = vmatpush2.msra.mxu0 0.0
    %137 = vmatprep.subr.mxu0 0.0
    %138 = vmatpush2.msra.mxu0 0.0
    %139 = vmatprep.subr.mxu0 0.0
    %140 = vmatpush2.msra.mxu0 0.0
    %141 = vmatprep.subr.mxu0 0.0
    %142 = vmatpush2.msra.mxu0 0.0
    %143 = vmatprep.subr.mxu0 0.0
    %144 = vmatpush2.msra.mxu0 0.0
    %145 = vmatprep.mubr.f32.mxu0 0.0
    %146 = vmatmul.mubr.f32.gmra.mxu0 %v79
    %v147 = vpop.f32.mrf.mxu0
    %v148 = vadd.f32 %v75, %v147
    %v149 = vpop.f32.mrf.mxu0
    %150 = vdwg.mxu0
    %v151 = vmax.f32 %v148, 0.0
    %v152 = vld [vmem:[#allocation4] sm:$0xff]
    %v153 = vld [vmem:[#allocation4 + $0x8] sm:$0xff]
    %v154 = vld [vmem:[#allocation4 + $0x10] sm:$0xff]
    %v155 = vld [vmem:[#allocation4 + $0x18] sm:$0xff]
    %v156 = vld [vmem:[#allocation4 + $0x20] sm:$0xff]
    %v157 = vld [vmem:[#allocation4 + $0x28] sm:$0xff]
    %v158 = vld [vmem:[#allocation4 + $0x30] sm:$0xff]
    %v159 = vld [vmem:[#allocation4 + $0x38] sm:$0xff]
    %v160 = vld [vmem:[#allocation4 + $0x40] sm:$0xff]
    %v161 = vld [vmem:[#allocation4 + $0x48] sm:$0xff]
    %v162 = vld [vmem:[#allocation4 + $0x50] sm:$0xff]
    %v163 = vld [vmem:[#allocation4 + $0x58] sm:$0xff]
    %v164 = vld [vmem:[#allocation4 + $0x60] sm:$0xff]
    %v165 = vld [vmem:[#allocation4 + $0x68] sm:$0xff]
    %v166 = vld [vmem:[#allocation4 + $0x70] sm:$0xff]
    %v167 = vld [vmem:[#allocation4 + $0x78] sm:$0xff]
    %v168 = vld [vmem:[%s4] sm:$0x1]
    %v170 = vlaneseq
    %v171 = vshrl.u32 %v170, 7
    %v172 = vsub.s32 0, %v171
    %v173 = vrot.slane %v168, %v172
    %175 = vmatprep.subr.mxu0 0.0
    %176 = vmatpush1.msra.mxu0 %v167
    %177 = vmatprep.subr.mxu0 0.0
    %178 = vmatpush1.msra.mxu0 %v166
    %179 = vmatprep.subr.mxu0 0.0
    %180 = vmatpush1.msra.mxu0 %v165
    %181 = vmatprep.subr.mxu0 0.0
    %182 = vmatpush1.msra.mxu0 %v164
    %183 = vmatprep.subr.mxu0 0.0
    %184 = vmatpush1.msra.mxu0 %v163
    %185 = vmatprep.subr.mxu0 0.0
    %186 = vmatpush1.msra.mxu0 %v162
    %187 = vmatprep.subr.mxu0 0.0
    %188 = vmatpush1.msra.mxu0 %v161
    %189 = vmatprep.subr.mxu0 0.0
    %190 = vmatpush1.msra.mxu0 %v160
    %191 = vmatprep.subr.mxu0 0.0
    %192 = vmatpush1.msra.mxu0 %v159
    %193 = vmatprep.subr.mxu0 0.0
    %194 = vmatpush1.msra.mxu0 %v158
    %195 = vmatprep.subr.mxu0 0.0
    %196 = vmatpush1.msra.mxu0 %v157
    %197 = vmatprep.subr.mxu0 0.0
    %198 = vmatpush1.msra.mxu0 %v156
    %199 = vmatprep.subr.mxu0 0.0
    %200 = vmatpush1.msra.mxu0 %v155
    %201 = vmatprep.subr.mxu0 0.0
    %202 = vmatpush1.msra.mxu0 %v154
    %203 = vmatprep.subr.mxu0 0.0
    %204 = vmatpush1.msra.mxu0 %v153
    %205 = vmatprep.subr.mxu0 0.0
    %206 = vmatpush1.msra.mxu0 %v152
    %207 = vmatprep.subr.mxu0 0.0
    %208 = vmatpush2.msra.mxu0 0.0
    %209 = vmatprep.subr.mxu0 0.0
    %210 = vmatpush2.msra.mxu0 0.0
    %211 = vmatprep.subr.mxu0 0.0
    %212 = vmatpush2.msra.mxu0 0.0
    %213 = vmatprep.subr.mxu0 0.0
    %214 = vmatpush2.msra.mxu0 0.0
    %215 = vmatprep.subr.mxu0 0.0
    %216 = vmatpush2.msra.mxu0 0.0
    %217 = vmatprep.subr.mxu0 0.0
    %218 = vmatpush2.msra.mxu0 0.0
    %219 = vmatprep.subr.mxu0 0.0
    %220 = vmatpush2.msra.mxu0 0.0
    %221 = vmatprep.subr.mxu0 0.0
    %222 = vmatpush2.msra.mxu0 0.0
    %223 = vmatprep.subr.mxu0 0.0
    %224 = vmatpush2.msra.mxu0 0.0
    %225 = vmatprep.subr.mxu0 0.0
    %226 = vmatpush2.msra.mxu0 0.0
    %227 = vmatprep.subr.mxu0 0.0
    %228 = vmatpush2.msra.mxu0 0.0
    %229 = vmatprep.subr.mxu0 0.0
    %230 = vmatpush2.msra.mxu0 0.0
    %231 = vmatprep.subr.mxu0 0.0
    %232 = vmatpush2.msra.mxu0 0.0
    %233 = vmatprep.subr.mxu0 0.0
    %234 = vmatpush2.msra.mxu0 0.0
    %235 = vmatprep.subr.mxu0 0.0
    %236 = vmatpush2.msra.mxu0 0.0
    %237 = vmatprep.subr.mxu0 0.0
    %238 = vmatpush2.msra.mxu0 0.0
    %239 = vmatprep.mubr.f32.mxu0 0.0
    %240 = vmatmul.mubr.f32.gmra.mxu0 %v151
    %v241 = vpop.f32.mrf.mxu0
    %v242 = vadd.f32 %v173, %v241
    %v243 = vpop.f32.mrf.mxu0
    %244 = vdwg.mxu0
    %v245 = vmax.f32 %v242, 0.0
    %v246 = vld [vmem:[#allocation6] sm:$0xff]
    %v247 = vld [vmem:[#allocation6 + $0x8] sm:$0xff]
    %v248 = vld [vmem:[#allocation6 + $0x10] sm:$0xff]
    %v249 = vld [vmem:[#allocation6 + $0x18] sm:$0xff]
    %v250 = vld [vmem:[#allocation6 + $0x20] sm:$0xff]
    %v251 = vld [vmem:[#allocation6 + $0x28] sm:$0xff]
    %v252 = vld [vmem:[#allocation6 + $0x30] sm:$0xff]
    %v253 = vld [vmem:[#allocation6 + $0x38] sm:$0xff]
    %v254 = vld [vmem:[#allocation6 + $0x40] sm:$0xff]
    %v255 = vld [vmem:[#allocation6 + $0x48] sm:$0xff]
    %v256 = vld [vmem:[#allocation6 + $0x50] sm:$0xff]
    %v257 = vld [vmem:[#allocation6 + $0x58] sm:$0xff]
    %v258 = vld [vmem:[#allocation6 + $0x60] sm:$0xff]
    %v259 = vld [vmem:[#allocation6 + $0x68] sm:$0xff]
    %v260 = vld [vmem:[#allocation6 + $0x70] sm:$0xff]
    %v261 = vld [vmem:[#allocation6 + $0x78] sm:$0xff]
    %v262 = vld [vmem:[%s6] sm:$0x1]
    %v264 = vlaneseq
    %v265 = vshrl.u32 %v264, 7
    %v266 = vsub.s32 0, %v265
    %v267 = vrot.slane %v262, %v266
    %269 = vmatprep.subr.mxu0 0.0
    %270 = vmatpush1.msra.mxu0 %v261
    %271 = vmatprep.subr.mxu0 0.0
    %272 = vmatpush1.msra.mxu0 %v260
    %273 = vmatprep.subr.mxu0 0.0
    %274 = vmatpush1.msra.mxu0 %v259
    %275 = vmatprep.subr.mxu0 0.0
    %276 = vmatpush1.msra.mxu0 %v258
    %277 = vmatprep.subr.mxu0 0.0
    %278 = vmatpush1.msra.mxu0 %v257
    %279 = vmatprep.subr.mxu0 0.0
    %280 = vmatpush1.msra.mxu0 %v256
    %281 = vmatprep.subr.mxu0 0.0
    %282 = vmatpush1.msra.mxu0 %v255
    %283 = vmatprep.subr.mxu0 0.0
    %284 = vmatpush1.msra.mxu0 %v254
    %285 = vmatprep.subr.mxu0 0.0
    %286 = vmatpush1.msra.mxu0 %v253
    %287 = vmatprep.subr.mxu0 0.0
    %288 = vmatpush1.msra.mxu0 %v252
    %289 = vmatprep.subr.mxu0 0.0
    %290 = vmatpush1.msra.mxu0 %v251
    %291 = vmatprep.subr.mxu0 0.0
    %292 = vmatpush1.msra.mxu0 %v250
    %293 = vmatprep.subr.mxu0 0.0
    %294 = vmatpush1.msra.mxu0 %v249
    %295 = vmatprep.subr.mxu0 0.0
    %296 = vmatpush1.msra.mxu0 %v248
    %297 = vmatprep.subr.mxu0 0.0
    %298 = vmatpush1.msra.mxu0 %v247
    %299 = vmatprep.subr.mxu0 0.0
    %300 = vmatpush1.msra.mxu0 %v246
    %301 = vmatprep.subr.mxu0 0.0
    %302 = vmatpush2.msra.mxu0 0.0
    %303 = vmatprep.subr.mxu0 0.0
    %304 = vmatpush2.msra.mxu0 0.0
    %305 = vmatprep.subr.mxu0 0.0
    %306 = vmatpush2.msra.mxu0 0.0
    %307 = vmatprep.subr.mxu0 0.0
    %308 = vmatpush2.msra.mxu0 0.0
    %309 = vmatprep.subr.mxu0 0.0
    %310 = vmatpush2.msra.mxu0 0.0
    %311 = vmatprep.subr.mxu0 0.0
    %312 = vmatpush2.msra.mxu0 0.0
    %313 = vmatprep.subr.mxu0 0.0
    %314 = vmatpush2.msra.mxu0 0.0
    %315 = vmatprep.subr.mxu0 0.0
    %316 = vmatpush2.msra.mxu0 0.0
    %317 = vmatprep.subr.mxu0 0.0
    %318 = vmatpush2.msra.mxu0 0.0
    %319 = vmatprep.subr.mxu0 0.0
    %320 = vmatpush2.msra.mxu0 0.0
    %321 = vmatprep.subr.mxu0 0.0
    %322 = vmatpush2.msra.mxu0 0.0
    %323 = vmatprep.subr.mxu0 0.0
    %324 = vmatpush2.msra.mxu0 0.0
    %325 = vmatprep.subr.mxu0 0.0
    %326 = vmatpush2.msra.mxu0 0.0
    %327 = vmatprep.subr.mxu0 0.0
    %328 = vmatpush2.msra.mxu0 0.0
    %329 = vmatprep.subr.mxu0 0.0
    %330 = vmatpush2.msra.mxu0 0.0
    %331 = vmatprep.subr.mxu0 0.0
    %332 = vmatpush2.msra.mxu0 0.0
    %333 = vmatprep.mubr.f32.mxu0 0.0
    %334 = vmatmul.mubr.f32.gmra.mxu0 %v245
    %v335 = vpop.f32.mrf.mxu0
    %v336 = vadd.f32 %v267, %v335
    %v337 = vpop.f32.mrf.mxu0
    %338 = vdwg.mxu0
    %339 = vst [vmem:[%s7] sm:$0xff] %v336
    // Predicated region
    $region42: #{fwd.1} parent=1 // pred_check
      _
    $region43: #{fwd.1} parent=1 // pred_check_branch
      %341 = sbr.rel (0) target = $region45
    $region44: #{fwd.1} parent=1 // pred_region
      _
    $region45: #{fwd.1} parent=1 // pred_fallthru
      _
    // Predicated region
    $region46: #{fwd.1} parent=1 // pred_check
      _
    $region47: #{fwd.1} parent=1 // pred_check_branch
      %343 = sbr.rel (0) target = $region49
    $region48: #{fwd.1} parent=1 // pred_region
      _
    $region49: #{fwd.1} parent=1 // pred_fallthru
      _
    %344 = vsyncpa [#allocation3], 1
    %345 = vsyncpa [#allocation5], 1

</llo_original>
